<compile_context>
chip_gen: v6e
topology: v6e:2x2x1
jax: 0.10.0
libtpu: 0.0.40
codegen_flags: <defaults>
</compile_context>

<pallas_src>
import jax
import jax.numpy as jnp
from jax.experimental import pallas as pl
from jax.experimental.pallas import tpu as pltpu


# Below this width an MXU matmul is <1% utilized (128x128 tiles on v5e,
# 2x256x256 on v6e/v7x) and just serializes on the result FIFO; the VPU
# broadcast-FMA path is cheaper and leaves the vector-extended slot free.
_MXU_MIN_DIM = 128


def _default_compute_dtype():
    """bf16 where the VPU/EUP are bf16-native (v6e/v7x); f32 otherwise (v5e-)."""
    try:
        kind = jax.devices()[0].device_kind.lower()
    except Exception:
        return jnp.float32
    if "v6" in kind or "v7" in kind:
        return jnp.bfloat16
    return jnp.float32


def _make_mlp_kernel(n_layers, compute_dtype):
    def kernel(*refs):
        """refs = (x_t_ref, w0, b0, ..., w_{L-1}, b_{L-1}, o_t_ref).

        Transposed-activation layout: activations are (features, TB), batch on
        the 128-wide lane axis.  Each layer: z = W @ h + b ; h = sigmoid(z).
        """
        x_ref = refs[0]
        o_ref = refs[-1]
        param_refs = refs[1:-1]

        h = x_ref[...].astype(compute_dtype)                 # (n_in, TB)
        for layer in range(n_layers):
            w = param_refs[2 * layer][...].astype(compute_dtype)      # (out_f, in_f)
            b = param_refs[2 * layer + 1][...].astype(compute_dtype)  # (out_f, 1)
            out_f, in_f = w.shape
            if in_f < _MXU_MIN_DIM or out_f < _MXU_MIN_DIM:
                # VPU path: z[j, :] = sum_k w[j, k] * h[k, :]  (broadcast FMAs).
                z = w[:, 0:1] * h[0:1, :]
                for k in range(1, in_f):
                    z = z + w[:, k:k + 1] * h[k:k + 1, :]
                z = z + b
            else:
                # MXU path for genuinely wide hidden layers.
                z = jnp.dot(w, h, preferred_element_type=jnp.float32)
                z = z.astype(compute_dtype) + b
            # sigmoid(z) = 0.5*(tanh(0.5*z) + 1): a single EUP push per vreg,
            # in bf16 on v6e/v7x (2x elements per push).
            h = 0.5 * (jnp.tanh(0.5 * z) + 1.0)
        o_ref[...] = h.astype(o_ref.dtype)
    return kernel


def prepare_params(params):
    """One-time (hoisted out of the hot path) conversion of PyTorch-convention
    params (weight (out, in), bias (out,)) to kernel layout: weight stays
    (out, in) — no transpose needed in the transposed-activation layout —
    and bias becomes (out, 1)."""
    prepped = []
    for w, b in params:
        prepped.append((jnp.asarray(w, jnp.float32),
                        jnp.asarray(b, jnp.float32).reshape(-1, 1)))
    return prepped


def _pick_batch_tile(batch, batch_tile):
    if batch <= 256:
        return batch                      # one tile; too small to split usefully
    # Aim for >= 2 tiles (so the "parallel" axis shards across v7x's two TCs),
    # each a multiple of 128 lanes and as large as batch_tile allows so the
    # ~0.35 us per-grid-step overhead is amortized by the per-tile DMA bytes.
    target = min(batch_tile, pl.cdiv(batch, 2))
    return max(128, (target // 128) * 128)


def mlp_forward_t(x_t, prepped_params, *, batch_tile=65536,
                  out_dtype=None, compute_dtype=None):
    """Hot-path entry point.  x_t: (n_in, batch), feature-major (batch on lanes).
    Returns (n_out, batch).  No wrapper-side transposes or extra dtype passes:
    do the one-time layout/dtype conversion of the dataset at data-prep time
    (ideally store it in bf16)."""
    n_in, batch = x_t.shape
    n_out = prepped_params[-1][0].shape[0]
    if out_dtype is None:
        out_dtype = x_t.dtype
    if compute_dtype is None:
        compute_dtype = _default_compute_dtype()

    tb = _pick_batch_tile(batch, batch_tile)
    grid = (pl.cdiv(batch, tb),)

    flat_args = [x_t]
    in_specs = [pl.BlockSpec((n_in, tb), lambda i: (0, i))]
    for w, b in prepped_params:
        flat_args += [w, b]
        # Tiny weights/biases stay VMEM-resident across every grid step.
        in_specs += [pl.BlockSpec(w.shape, lambda i: (0, 0)),
                     pl.BlockSpec(b.shape, lambda i: (0, 0))]

    kernel = _make_mlp_kernel(len(prepped_params), compute_dtype)
    return pl.pallas_call(
        kernel,
        out_shape=jax.ShapeDtypeStruct((n_out, batch), out_dtype),
        grid=grid,
        in_specs=in_specs,
        out_specs=pl.BlockSpec((n_out, tb), lambda i: (0, i)),
        compiler_params=pltpu.CompilerParams(
            dimension_semantics=("parallel",),       # batch tiles shard across TCs
            vmem_limit_bytes=32 * 1024 * 1024),      # headroom for big tiles (v5e)
    )(*flat_args)


def mlp_forward(x, prepped_params, **kwargs):
    """Compatibility wrapper matching Net.forward: x (batch, n_in) -> (batch, n_out).
    The x transpose here costs an extra HBM pass; prefer mlp_forward_t with
    feature-major data prepared once outside the hot loop."""
    batch, _ = x.shape
    out_t = mlp_forward_t(x.T, prepped_params, **kwargs)
    n_out = out_t.shape[0]
    if n_out == 1:
        return out_t.reshape(batch, 1)    # metadata-only, no transpose
    return out_t.T


def init_net_params(key, n_input=2, n_output=1, n_hidden_layers=1,
                    n_hidden_nodes=10):
    """Deterministic init mirroring PyTorch nn.Linear default
    (uniform(-1/sqrt(fan_in), 1/sqrt(fan_in)) for both weight and bias)."""
    dims = [n_input] + [n_hidden_nodes] * n_hidden_layers + [n_output]
    params = []
    for i in range(len(dims) - 1):
        fan_in, fan_out = dims[i], dims[i + 1]
        key, kw, kb = jax.random.split(key, 3)
        bound = 1.0 / jnp.sqrt(jnp.float32(fan_in))
        w = jax.random.uniform(kw, (fan_out, fan_in), jnp.float32,
                               minval=-bound, maxval=bound)
        b = jax.random.uniform(kb, (fan_out,), jnp.float32,
                               minval=-bound, maxval=bound)
        params.append((w, b))
    return params


def reference_forward(x, params):
    """Pure-JAX reference matching the PyTorch forward exactly."""
    h = x
    for w, b in params:
        h = jax.nn.sigmoid(h @ w.T + b)
    return h


if __name__ == "__main__":
    key = jax.random.PRNGKey(0)
    key, kx1, kx2, kx3 = jax.random.split(key, 4)

    # Module defaults: N_input=2, N_output=1, N_hidden_layers=1, N_hidden_nodes=10
    n_input, n_output, n_hidden_layers, n_hidden_nodes = 2, 1, 1, 10
    params = init_net_params(key, n_input, n_output, n_hidden_layers,
                             n_hidden_nodes)
    kparams = prepare_params(params)   # hoisted out of the per-call hot path

    # 1) Small batch, f32 compute: tight check, single grid step.
    x_small = jax.random.normal(kx1, (8, n_input), dtype=jnp.float32)
    out_small = jax.block_until_ready(
        mlp_forward(x_small, kparams, compute_dtype=jnp.float32))
    ref_small = reference_forward(x_small, params)
    assert out_small.shape == (8, n_output), out_small.shape
    assert jnp.allclose(out_small, ref_small, atol=1e-5, rtol=1e-5), (
        f"max err {jnp.max(jnp.abs(out_small - ref_small))}")

    # 2) Feature-major hot path, f32 compute: multiple grid steps + a partial
    #    trailing batch tile (640 -> tiles of 256, last one partial).
    x_big = jax.random.normal(kx2, (640, n_input), dtype=jnp.float32)
    out_big_t = jax.block_until_ready(
        mlp_forward_t(x_big.T, kparams, compute_dtype=jnp.float32))
    ref_big = reference_forward(x_big, params)
    assert out_big_t.shape == (n_output, 640), out_big_t.shape
    assert jnp.allclose(out_big_t.T, ref_big, atol=1e-5, rtol=1e-5), (
        f"max err {jnp.max(jnp.abs(out_big_t.T - ref_big))}")

    # 3) bf16 I/O with chip-default compute dtype (bf16 on v6e/v7x, f32 on v5e):
    #    exercises the halved-HBM-bytes path; looser tolerance for bf16 rounding.
    x_bf = jax.random.normal(kx3, (1024, n_input), dtype=jnp.float32)
    out_bf_t = jax.block_until_ready(
        mlp_forward_t(x_bf.T.astype(jnp.bfloat16), kparams))
    ref_bf = reference_forward(x_bf, params)
    assert out_bf_t.shape == (n_output, 1024), out_bf_t.shape
    assert jnp.allclose(out_bf_t.T.astype(jnp.float32), ref_bf,
                        atol=5e-2, rtol=5e-2), (
        f"max err {jnp.max(jnp.abs(out_bf_t.T.astype(jnp.float32) - ref_bf))}")

    print("KERNEL_OK")
</pallas_src>

<mosaic_0001>
module attributes {stable_mosaic.version = 11 : i64} {
  func.func @kernel(%arg0: i32, %arg1: memref<2x8xf32, #tpu.memory_space<vmem>>, %arg2: memref<10x2xf32, #tpu.memory_space<vmem>>, %arg3: memref<10x1xf32, #tpu.memory_space<vmem>>, %arg4: memref<1x10xf32, #tpu.memory_space<vmem>>, %arg5: memref<1x1xf32, #tpu.memory_space<vmem>>, %arg6: memref<1x8xf32, #tpu.memory_space<vmem>>) attributes {dimension_semantics = [#tpu.dimension_semantics<parallel>], iteration_bounds = array<i64: 1>, scalar_prefetch = 0 : i64, scratch_operands = 0 : i64, tpu.core_type = #tpu.core_type<tc>, window_params = [{transform_indices = @transform_0, window_bounds = array<i64: 2, 8>}, {pipeline_mode = #tpu.pipeline_mode<synchronous>, transform_indices = @transform_1, window_bounds = array<i64: 10, 2>}, {pipeline_mode = #tpu.pipeline_mode<synchronous>, transform_indices = @transform_2, window_bounds = array<i64: 10, 1>}, {pipeline_mode = #tpu.pipeline_mode<synchronous>, transform_indices = @transform_3, window_bounds = array<i64: 1, 10>}, {pipeline_mode = #tpu.pipeline_mode<synchronous>, transform_indices = @transform_4, window_bounds = array<i64: 1, 1>}, {transform_indices = @transform_5, window_bounds = array<i64: 1, 8>}]} {
    %c0 = arith.constant 0 : index
    %c0_0 = arith.constant 0 : index
    %0 = vector.load %arg1[%c0, %c0_0] : memref<2x8xf32, #tpu.memory_space<vmem>>, vector<2x8xf32>
    %c0_1 = arith.constant 0 : index
    %c0_2 = arith.constant 0 : index
    %1 = vector.load %arg2[%c0_1, %c0_2] : memref<10x2xf32, #tpu.memory_space<vmem>>, vector<10x2xf32>
    %c0_3 = arith.constant 0 : index
    %c0_4 = arith.constant 0 : index
    %2 = vector.load %arg3[%c0_3, %c0_4] : memref<10x1xf32, #tpu.memory_space<vmem>>, vector<10x1xf32>
    %3 = vector.extract_strided_slice %1 {offsets = [0, 0], sizes = [10, 1], strides = [1, 1]} : vector<10x2xf32> to vector<10x1xf32>
    %4 = vector.extract_strided_slice %0 {offsets = [0, 0], sizes = [1, 8], strides = [1, 1]} : vector<2x8xf32> to vector<1x8xf32>
    %5 = vector.broadcast %3 : vector<10x1xf32> to vector<10x8xf32>
    %6 = vector.broadcast %4 : vector<1x8xf32> to vector<10x8xf32>
    %7 = arith.mulf %5, %6 : vector<10x8xf32>
    %8 = vector.extract_strided_slice %1 {offsets = [0, 1], sizes = [10, 1], strides = [1, 1]} : vector<10x2xf32> to vector<10x1xf32>
    %9 = vector.extract_strided_slice %0 {offsets = [1, 0], sizes = [1, 8], strides = [1, 1]} : vector<2x8xf32> to vector<1x8xf32>
    %10 = vector.broadcast %8 : vector<10x1xf32> to vector<10x8xf32>
    %11 = vector.broadcast %9 : vector<1x8xf32> to vector<10x8xf32>
    %12 = arith.mulf %10, %11 : vector<10x8xf32>
    %13 = arith.addf %7, %12 : vector<10x8xf32>
    %14 = vector.broadcast %2 : vector<10x1xf32> to vector<10x8xf32>
    %15 = arith.addf %13, %14 : vector<10x8xf32>
    %cst = arith.constant 5.000000e-01 : f32
    %16 = vector.broadcast %cst : f32 to vector<10x8xf32>
    %17 = arith.mulf %16, %15 : vector<10x8xf32>
    %18 = math.tanh %17 : vector<10x8xf32>
    %cst_5 = arith.constant 1.000000e+00 : f32
    %19 = vector.broadcast %cst_5 : f32 to vector<10x8xf32>
    %20 = arith.addf %18, %19 : vector<10x8xf32>
    %cst_6 = arith.constant 5.000000e-01 : f32
    %21 = vector.broadcast %cst_6 : f32 to vector<10x8xf32>
    %22 = arith.mulf %21, %20 : vector<10x8xf32>
    %c0_7 = arith.constant 0 : index
    %c0_8 = arith.constant 0 : index
    %23 = vector.load %arg4[%c0_7, %c0_8] : memref<1x10xf32, #tpu.memory_space<vmem>>, vector<1x10xf32>
    %c0_9 = arith.constant 0 : index
    %c0_10 = arith.constant 0 : index
    %24 = vector.load %arg5[%c0_9, %c0_10] : memref<1x1xf32, #tpu.memory_space<vmem>>, vector<1x1xf32>
    %25 = vector.extract_strided_slice %23 {offsets = [0, 0], sizes = [1, 1], strides = [1, 1]} : vector<1x10xf32> to vector<1x1xf32>
    %26 = vector.extract_strided_slice %22 {offsets = [0, 0], sizes = [1, 8], strides = [1, 1]} : vector<10x8xf32> to vector<1x8xf32>
    %27 = vector.broadcast %25 : vector<1x1xf32> to vector<1x8xf32>
    %28 = arith.mulf %27, %26 : vector<1x8xf32>
    %29 = vector.extract_strided_slice %23 {offsets = [0, 1], sizes = [1, 1], strides = [1, 1]} : vector<1x10xf32> to vector<1x1xf32>
    %30 = vector.extract_strided_slice %22 {offsets = [1, 0], sizes = [1, 8], strides = [1, 1]} : vector<10x8xf32> to vector<1x8xf32>
    %31 = vector.broadcast %29 : vector<1x1xf32> to vector<1x8xf32>
    %32 = arith.mulf %31, %30 : vector<1x8xf32>
    %33 = arith.addf %28, %32 : vector<1x8xf32>
    %34 = vector.extract_strided_slice %23 {offsets = [0, 2], sizes = [1, 1], strides = [1, 1]} : vector<1x10xf32> to vector<1x1xf32>
    %35 = vector.extract_strided_slice %22 {offsets = [2, 0], sizes = [1, 8], strides = [1, 1]} : vector<10x8xf32> to vector<1x8xf32>
    %36 = vector.broadcast %34 : vector<1x1xf32> to vector<1x8xf32>
    %37 = arith.mulf %36, %35 : vector<1x8xf32>
    %38 = arith.addf %33, %37 : vector<1x8xf32>
    %39 = vector.extract_strided_slice %23 {offsets = [0, 3], sizes = [1, 1], strides = [1, 1]} : vector<1x10xf32> to vector<1x1xf32>
    %40 = vector.extract_strided_slice %22 {offsets = [3, 0], sizes = [1, 8], strides = [1, 1]} : vector<10x8xf32> to vector<1x8xf32>
    %41 = vector.broadcast %39 : vector<1x1xf32> to vector<1x8xf32>
    %42 = arith.mulf %41, %40 : vector<1x8xf32>
    %43 = arith.addf %38, %42 : vector<1x8xf32>
    %44 = vector.extract_strided_slice %23 {offsets = [0, 4], sizes = [1, 1], strides = [1, 1]} : vector<1x10xf32> to vector<1x1xf32>
    %45 = vector.extract_strided_slice %22 {offsets = [4, 0], sizes = [1, 8], strides = [1, 1]} : vector<10x8xf32> to vector<1x8xf32>
    %46 = vector.broadcast %44 : vector<1x1xf32> to vector<1x8xf32>
    %47 = arith.mulf %46, %45 : vector<1x8xf32>
    %48 = arith.addf %43, %47 : vector<1x8xf32>
    %49 = vector.extract_strided_slice %23 {offsets = [0, 5], sizes = [1, 1], strides = [1, 1]} : vector<1x10xf32> to vector<1x1xf32>
    %50 = vector.extract_strided_slice %22 {offsets = [5, 0], sizes = [1, 8], strides = [1, 1]} : vector<10x8xf32> to vector<1x8xf32>
    %51 = vector.broadcast %49 : vector<1x1xf32> to vector<1x8xf32>
    %52 = arith.mulf %51, %50 : vector<1x8xf32>
    %53 = arith.addf %48, %52 : vector<1x8xf32>
    %54 = vector.extract_strided_slice %23 {offsets = [0, 6], sizes = [1, 1], strides = [1, 1]} : vector<1x10xf32> to vector<1x1xf32>
    %55 = vector.extract_strided_slice %22 {offsets = [6, 0], sizes = [1, 8], strides = [1, 1]} : vector<10x8xf32> to vector<1x8xf32>
    %56 = vector.broadcast %54 : vector<1x1xf32> to vector<1x8xf32>
    %57 = arith.mulf %56, %55 : vector<1x8xf32>
    %58 = arith.addf %53, %57 : vector<1x8xf32>
    %59 = vector.extract_strided_slice %23 {offsets = [0, 7], sizes = [1, 1], strides = [1, 1]} : vector<1x10xf32> to vector<1x1xf32>
    %60 = vector.extract_strided_slice %22 {offsets = [7, 0], sizes = [1, 8], strides = [1, 1]} : vector<10x8xf32> to vector<1x8xf32>
    %61 = vector.broadcast %59 : vector<1x1xf32> to vector<1x8xf32>
    %62 = arith.mulf %61, %60 : vector<1x8xf32>
    %63 = arith.addf %58, %62 : vector<1x8xf32>
    %64 = vector.extract_strided_slice %23 {offsets = [0, 8], sizes = [1, 1], strides = [1, 1]} : vector<1x10xf32> to vector<1x1xf32>
    %65 = vector.extract_strided_slice %22 {offsets = [8, 0], sizes = [1, 8], strides = [1, 1]} : vector<10x8xf32> to vector<1x8xf32>
    %66 = vector.broadcast %64 : vector<1x1xf32> to vector<1x8xf32>
    %67 = arith.mulf %66, %65 : vector<1x8xf32>
    %68 = arith.addf %63, %67 : vector<1x8xf32>
    %69 = vector.extract_strided_slice %23 {offsets = [0, 9], sizes = [1, 1], strides = [1, 1]} : vector<1x10xf32> to vector<1x1xf32>
    %70 = vector.extract_strided_slice %22 {offsets = [9, 0], sizes = [1, 8], strides = [1, 1]} : vector<10x8xf32> to vector<1x8xf32>
    %71 = vector.broadcast %69 : vector<1x1xf32> to vector<1x8xf32>
    %72 = arith.mulf %71, %70 : vector<1x8xf32>
    %73 = arith.addf %68, %72 : vector<1x8xf32>
    %74 = vector.broadcast %24 : vector<1x1xf32> to vector<1x8xf32>
    %75 = arith.addf %73, %74 : vector<1x8xf32>
    %cst_11 = arith.constant 5.000000e-01 : f32
    %76 = vector.broadcast %cst_11 : f32 to vector<1x8xf32>
    %77 = arith.mulf %76, %75 : vector<1x8xf32>
    %78 = math.tanh %77 : vector<1x8xf32>
    %cst_12 = arith.constant 1.000000e+00 : f32
    %79 = vector.broadcast %cst_12 : f32 to vector<1x8xf32>
    %80 = arith.addf %78, %79 : vector<1x8xf32>
    %cst_13 = arith.constant 5.000000e-01 : f32
    %81 = vector.broadcast %cst_13 : f32 to vector<1x8xf32>
    %82 = arith.mulf %81, %80 : vector<1x8xf32>
    %c0_14 = arith.constant 0 : index
    %c0_15 = arith.constant 0 : index
    %83 = vector.load %arg6[%c0_14, %c0_15] : memref<1x8xf32, #tpu.memory_space<vmem>>, vector<1x8xf32>
    tpu.vector_store %arg6[%c0_14, %c0_15], %82 {strides = array<i32>} : memref<1x8xf32, #tpu.memory_space<vmem>>, vector<1x8xf32>,
    return
  }
  func.func @transform_0(%arg0: i32) -> (i32, i32) {
    %c0_i32 = arith.constant 0 : i32
    %c0_i32_0 = arith.constant 0 : i32
    return %c0_i32, %arg0 : i32, i32
  }
  func.func @transform_1(%arg0: i32) -> (i32, i32) {
    %c0_i32 = arith.constant 0 : i32
    %c0_i32_0 = arith.constant 0 : i32
    %c0_i32_1 = arith.constant 0 : i32
    return %c0_i32, %c0_i32_0 : i32, i32
  }
  func.func @transform_2(%arg0: i32) -> (i32, i32) {
    %c0_i32 = arith.constant 0 : i32
    %c0_i32_0 = arith.constant 0 : i32
    %c0_i32_1 = arith.constant 0 : i32
    return %c0_i32, %c0_i32_0 : i32, i32
  }
  func.func @transform_3(%arg0: i32) -> (i32, i32) {
    %c0_i32 = arith.constant 0 : i32
    %c0_i32_0 = arith.constant 0 : i32
    %c0_i32_1 = arith.constant 0 : i32
    return %c0_i32, %c0_i32_0 : i32, i32
  }
  func.func @transform_4(%arg0: i32) -> (i32, i32) {
    %c0_i32 = arith.constant 0 : i32
    %c0_i32_0 = arith.constant 0 : i32
    %c0_i32_1 = arith.constant 0 : i32
    return %c0_i32, %c0_i32_0 : i32, i32
  }
  func.func @transform_5(%arg0: i32) -> (i32, i32) {
    %c0_i32 = arith.constant 0 : i32
    %c0_i32_0 = arith.constant 0 : i32
    return %c0_i32, %arg0 : i32, i32
  }
}

</mosaic_0001>

<llo_original>
// kernel: tpu_custom_call.1
$region0: #{tpu_custom_call.1}
  #allocation0 [shape = 'u32[]', space=smem, size = 0x4, offset = 0x4, fixed_abs, tag = 'smem constant byte address 0x4 - core index']
  #allocation1 [shape = 'u32[144,128]{1,0:T(1,128)}', space=vmem, size = 0x12000, scoped, tag = 'internal scratch']
  #allocation2 [shape = 'f32[1,1]{1,0:T(1,128)S(1)}', space=vmem, size = 0x200, scoped, tag = 'scoped memory for tpu_custom_call.1']
  %s0 = inlined_call_operand.vmem [shape: f32[2,8], index: 0, kind: input, shape index: {}]
  %s1 = inlined_call_operand.vmem [shape: f32[10,2], index: 1, kind: input, shape index: {}]
  %s2 = inlined_call_operand.vmem [shape: f32[10,1], index: 2, kind: input, shape index: {}]
  %s3 = inlined_call_operand.vmem [shape: f32[1,10], index: 3, kind: input, shape index: {}]
  %s4 = inlined_call_operand.<no memory space> [shape: f32[1,1], index: 4, kind: input, shape index: {}]
  %s5 = inlined_call_operand.hbm [shape: f32[1,8], index: 5, kind: output, shape index: {}]
  %s6 = sld [smem:[#allocation0]]
  $region30: #{tpu_custom_call.1} parent=0
    _
  %s8 = ssub.s32 1, %s6
  %s9 = scalar_select 0, %s8, %s6
  %v10 = vstv %s4
  %11 = vst [vmem:[#allocation2] sm:$0x1] %v10
  $region1: #{tpu_custom_call.1} parent=0
    #allocation3 [shape = 'u8[512]{0}', space=vmem, size = 0x400, scoped, tag = 'output window, operand 0, single buffered']
    #allocation4 [shape = 's32[1]{0}', space=sflag, size = 0x4, scoped, tag = 'scoped memory for tpu_custom_call.1']
    %12 = vsyncpa [#allocation4], 0
    // Predicated region
    $region2: #{tpu_custom_call.1} parent=1 // pred_check
      _
    $region3: #{tpu_custom_call.1} parent=1 // pred_check_branch
      %14 = sbr.rel (0) target = $region5
    $region4: #{tpu_custom_call.1} parent=1 // pred_region
      _
    $region5: #{tpu_custom_call.1} parent=1 // pred_fallthru
      _
    // Predicated region
    $region6: #{tpu_custom_call.1} parent=1 // pred_check
      _
    $region7: #{tpu_custom_call.1} parent=1 // pred_check_branch
      %16 = sbr.rel (0) target = $region9
    $region8: #{tpu_custom_call.1} parent=1 // pred_region
      _
    $region9: #{tpu_custom_call.1} parent=1 // pred_fallthru
      _
    // Predicated region
    $region10: #{tpu_custom_call.1} parent=1 // pred_check
      _
    $region11: #{tpu_custom_call.1} parent=1 // pred_check_branch
      %18 = sbr.rel (0) target = $region13
    $region12: #{tpu_custom_call.1} parent=1 // pred_region
      _
    $region13: #{tpu_custom_call.1} parent=1 // pred_fallthru
      _
    // Predicated region
    $region14: #{tpu_custom_call.1} parent=1 // pred_check
      _
    $region15: #{tpu_custom_call.1} parent=1 // pred_check_branch
      %20 = sbr.rel (0) target = $region17
    $region16: #{tpu_custom_call.1} parent=1 // pred_region
      _
    $region17: #{tpu_custom_call.1} parent=1 // pred_fallthru
      _
    // Predicated region
    $region18: #{tpu_custom_call.1} parent=1 // pred_check
      _
    $region19: #{tpu_custom_call.1} parent=1 // pred_check_branch
      %22 = sbr.rel (0) target = $region21
    $region20: #{tpu_custom_call.1} parent=1 // pred_region
      _
    $region21: #{tpu_custom_call.1} parent=1 // pred_fallthru
      _
    %v23 = vld [vmem:[%s0] sm:$0x3]
    %v24 = vld [vmem:[%s1] sm:$0xff]
    %v25 = vld [vmem:[%s1 + $0x8] sm:$0x3]
    %v26 = vld [vmem:[%s2] sm:$0xff]
    %v27 = vld [vmem:[%s2 + $0x8] sm:$0x3]
    %29 = vset.pattern.permute.xlu0 0
    %30 = vperm.xlu0 %29, %v24
    %v31 = vpop.permute.xlu0 %30
    %34 = vset.pattern.permute.xlu0 0
    %35 = vperm.xlu0 %34, %v25
    %v36 = vpop.permute.xlu0 %35
    %v38 = vlaneseq
    %v39 = vshrl.u32 %v38, 7
    %v40 = vsub.s32 0, %v39
    %v41 = vrot.slane %v23, %v40
    %v42 = vmul.f32 %v31, %v41
    %v43 = vmul.f32 %v36, %v41
    %44 = vset.pattern.permute.xlu0 1
    %45 = vperm.xlu0 %44, %v24
    %v46 = vpop.permute.xlu0 %45
    %48 = vset.pattern.permute.xlu0 1
    %49 = vperm.xlu0 %48, %v25
    %v50 = vpop.permute.xlu0 %49
    %v52 = vlaneseq
    %v53 = vshrl.u32 %v52, 7
    %v54 = vsub.s32 1, %v53
    %v55 = vrot.slane %v23, %v54
    %v56 = vmul.f32 %v46, %v55
    %v57 = vmul.f32 %v50, %v55
    %v58 = vadd.f32 %v42, %v56
    %v59 = vadd.f32 %v43, %v57
    %61 = vset.pattern.permute.xlu0 0
    %62 = vperm.xlu0 %61, %v26
    %v63 = vpop.permute.xlu0 %62
    %66 = vset.pattern.permute.xlu0 0
    %67 = vperm.xlu0 %66, %v27
    %v68 = vpop.permute.xlu0 %67
    %v70 = vadd.f32 %v58, %v63
    %v71 = vadd.f32 %v59, %v68
    %v72 = vmul.f32 %v70, 0.5
    %v73 = vmul.f32 %v71, 0.5
    %v74 = vtanh.pop %v72
    %v75 = vtanh.pop %v73
    %v76 = vadd.f32 %v74, 1.0
    %v77 = vadd.f32 %v75, 1.0
    %v78 = vmul.f32 %v76, 0.5
    %v79 = vmul.f32 %v77, 0.5
    %v80 = vld [vmem:[%s3] sm:$0x1]
    %v81 = vld [vmem:[#allocation2] sm:$0x1]
    %83 = vset.pattern.permute.xlu0 0
    %84 = vperm.xlu0 %83, %v80
    %v85 = vpop.permute.xlu0 %84
    %v87 = vlaneseq
    %v88 = vshrl.u32 %v87, 7
    %v89 = vsub.s32 0, %v88
    %v90 = vrot.slane %v85, %v89
    %v91 = vmul.f32 %v90, %v78
    %92 = vset.pattern.permute.xlu0 1
    %93 = vperm.xlu0 %92, %v80
    %v94 = vpop.permute.xlu0 %93
    %v96 = vlaneseq
    %v97 = vshrl.u32 %v96, 7
    %v98 = vsub.s32 0, %v97
    %v99 = vrot.slane %v94, %v98
    %v100 = vmul.f32 %v99, %v78
    %v102 = vrot.slane %v100, 1
    %v104 = vadd.f32 %v91, %v102
    %105 = vset.pattern.permute.xlu0 2
    %106 = vperm.xlu0 %105, %v80
    %v107 = vpop.permute.xlu0 %106
    %v109 = vlaneseq
    %v110 = vshrl.u32 %v109, 7
    %v111 = vsub.s32 0, %v110
    %v112 = vrot.slane %v107, %v111
    %v113 = vmul.f32 %v112, %v78
    %v115 = vrot.slane %v113, 2
    %v117 = vadd.f32 %v104, %v115
    %118 = vset.pattern.permute.xlu0 3
    %119 = vperm.xlu0 %118, %v80
    %v120 = vpop.permute.xlu0 %119
    %v122 = vlaneseq
    %v123 = vshrl.u32 %v122, 7
    %v124 = vsub.s32 0, %v123
    %v125 = vrot.slane %v120, %v124
    %v126 = vmul.f32 %v125, %v78
    %v128 = vrot.slane %v126, 3
    %v130 = vadd.f32 %v117, %v128
    %131 = vset.pattern.permute.xlu0 4
    %132 = vperm.xlu0 %131, %v80
    %v133 = vpop.permute.xlu0 %132
    %v135 = vlaneseq
    %v136 = vshrl.u32 %v135, 7
    %v137 = vsub.s32 0, %v136
    %v138 = vrot.slane %v133, %v137
    %v139 = vmul.f32 %v138, %v78
    %v141 = vrot.slane %v139, 4
    %v143 = vadd.f32 %v130, %v141
    %144 = vset.pattern.permute.xlu0 5
    %145 = vperm.xlu0 %144, %v80
    %v146 = vpop.permute.xlu0 %145
    %v148 = vlaneseq
    %v149 = vshrl.u32 %v148, 7
    %v150 = vsub.s32 0, %v149
    %v151 = vrot.slane %v146, %v150
    %v152 = vmul.f32 %v151, %v78
    %v154 = vrot.slane %v152, 5
    %v156 = vadd.f32 %v143, %v154
    %157 = vset.pattern.permute.xlu0 6
    %158 = vperm.xlu0 %157, %v80
    %v159 = vpop.permute.xlu0 %158
    %v161 = vlaneseq
    %v162 = vshrl.u32 %v161, 7
    %v163 = vsub.s32 0, %v162
    %v164 = vrot.slane %v159, %v163
    %v165 = vmul.f32 %v164, %v78
    %v167 = vrot.slane %v165, 6
    %v169 = vadd.f32 %v156, %v167
    %170 = vset.pattern.permute.xlu0 7
    %171 = vperm.xlu0 %170, %v80
    %v172 = vpop.permute.xlu0 %171
    %v174 = vlaneseq
    %v175 = vshrl.u32 %v174, 7
    %v176 = vsub.s32 0, %v175
    %v177 = vrot.slane %v172, %v176
    %v178 = vmul.f32 %v177, %v78
    %v180 = vrot.slane %v178, 7
    %v182 = vadd.f32 %v169, %v180
    %183 = vset.pattern.permute.xlu0 8
    %184 = vperm.xlu0 %183, %v80
    %v185 = vpop.permute.xlu0 %184
    %v187 = vlaneseq
    %v188 = vshrl.u32 %v187, 7
    %v189 = vsub.s32 0, %v188
    %v190 = vrot.slane %v185, %v189
    %v191 = vmul.f32 %v190, %v79
    %v192 = vadd.f32 %v182, %v191
    %193 = vset.pattern.permute.xlu0 9
    %194 = vperm.xlu0 %193, %v80
    %v195 = vpop.permute.xlu0 %194
    %v197 = vlaneseq
    %v198 = vshrl.u32 %v197, 7
    %v199 = vsub.s32 0, %v198
    %v200 = vrot.slane %v195, %v199
    %v201 = vmul.f32 %v200, %v79
    %v203 = vrot.slane %v201, 1
    %v205 = vadd.f32 %v192, %v203
    %207 = vset.pattern.permute.xlu0 0
    %208 = vperm.xlu0 %207, %v81
    %v209 = vpop.permute.xlu0 %208
    %v211 = vlaneseq
    %v212 = vshrl.u32 %v211, 7
    %v213 = vsub.s32 0, %v212
    %v214 = vrot.slane %v209, %v213
    %v215 = vadd.f32 %v205, %v214
    %v216 = vmul.f32 %v215, 0.5
    %v217 = vtanh.pop %v216
    %v218 = vadd.f32 %v217, 1.0
    %v219 = vmul.f32 %v218, 0.5
    %vm220 = vcmask 57344
    %221 = vst.msk [vmem:[#allocation3] sm:$0x1] %vm220, %v219
    // Predicated region
    $region22: #{tpu_custom_call.1} parent=1 // pred_check
      _
    $region23: #{tpu_custom_call.1} parent=1 // pred_check_branch
      %223 = sbr.rel (0) target = $region25
    $region24: #{tpu_custom_call.1} parent=1 // pred_region
      %s225 = ssub.s32 16, 16
      %226 = vsyncadd [#allocation4], %s225
      %s228 = sshll.u32 [#allocation3], 4
      %s229 = int_to_ptr.vmem [resolvable:$true] %s228
      %231 = dma.vmem_to_hbm [thread:$0]  %s229, 16, %s5, [#allocation4]
    $region25: #{tpu_custom_call.1} parent=1 // pred_fallthru
      _
    // Predicated region
    $region26: #{tpu_custom_call.1} parent=1 // pred_check
      _
    $region27: #{tpu_custom_call.1} parent=1 // pred_check_branch
      %233 = sbr.rel (0) target = $region29
    $region28: #{tpu_custom_call.1} parent=1 // pred_region
      %234 = dma.done [#allocation4], 16
    $region29: #{tpu_custom_call.1} parent=1 // pred_fallthru
      _
    %235 = vsyncpa [#allocation4], 1

</llo_original>
